<compile_context>
chip_gen: v7x
topology: tpu7x:2x2x1
jax: 0.10.0
libtpu: 0.0.40
codegen_flags: <defaults>
</compile_context>

<pallas_src>
import functools
import math

import jax
import jax.numpy as jnp
from jax.experimental import pallas as pl
from jax.experimental.pallas import tpu as pltpu

LN_EPS = 1e-12                      # HF ViTConfig.layer_norm_eps default
VMEM_LIMIT_BYTES = 64 * 1024 * 1024 # explicit scoped-VMEM limit
NEG_INF = -1e30


def _round_up(x, m):
    return (x + m - 1) // m * m


def _pick_batch_block(batch, batch_block=None):
    if batch_block is not None:
        assert batch % batch_block == 0
        return batch_block
    # Prefer >= 2 grid steps (v7x has 2 TensorCores) while keeping Bt*S as large
    # as possible to feed the MXU.
    for bt in (4, 2, 1):
        if batch % bt == 0 and (batch // bt) >= 2:
            return bt
    return batch


def _layernorm(x, w, b):
    mu = jnp.mean(x, axis=-1, keepdims=True)
    var = jnp.mean(jnp.square(x - mu), axis=-1, keepdims=True)
    return (x - mu) * jax.lax.rsqrt(var + LN_EPS) * w + b


# ----------------------------------------------------------------------------
# Fused embedding kernel: patch matmul + bias + pos emb + cls token + prompt
# prepend + zero padding of the sequence, all in one pallas_call.
# Patches arrive batch-flattened: (B*P, K); one big-M matmul per grid step.
# ----------------------------------------------------------------------------
def _embed_kernel(n_prompt, n_patches, seq_valid,
                  patches_ref, prompt_ref, w_ref, b_ref, cls_ref, pos_ref,
                  out_ref):
    Bt = prompt_ref.shape[0]
    D = w_ref.shape[1]
    L, P = n_prompt, n_patches
    S_pad = out_ref.shape[1]
    pad_rows = S_pad - seq_valid

    # single patch projection for the whole batch block (M = Bt*P rows)
    pe_all = jnp.dot(patches_ref[...].astype(jnp.bfloat16), w_ref[...],
                     preferred_element_type=jnp.float32)           # (Bt*P, D) fp32

    cls_row = cls_ref[...] + pos_ref[0:1, :]                       # (1, D)
    pos_patch = pos_ref[1:1 + P, :]                                # (P, D)

    for b in range(Bt):                                            # static unroll
        pe = pe_all[b * P:(b + 1) * P, :] + b_ref[...] + pos_patch # (P, D)
        rows = [prompt_ref[b], cls_row, pe]
        if pad_rows:
            rows.append(jnp.zeros((pad_rows, D), jnp.float32))
        # one dense (S_pad, D) store per batch element
        out_ref[b] = jnp.concatenate(rows, axis=0)


def embed_and_prepend(patches2, prompt0, params, *, n_patches, seq_pad,
                      batch_block, vmem_limit_bytes=VMEM_LIMIT_BYTES):
    BP, K = patches2.shape
    P = n_patches
    B = BP // P
    L = prompt0.shape[1]
    D = params["patch_w"].shape[1]
    S_valid = L + 1 + P
    Bt = batch_block
    kern = functools.partial(_embed_kernel, L, P, S_valid)
    wspec = pl.BlockSpec(memory_space=pltpu.MemorySpace.VMEM)  # whole array, 1 buffer
    return pl.pallas_call(
        kern,
        out_shape=jax.ShapeDtypeStruct((B, seq_pad, D), jnp.float32),
        grid=(B // Bt,),
        in_specs=[
            pl.BlockSpec((Bt * P, K), lambda b: (b, 0)),
            pl.BlockSpec((Bt, L, D), lambda b: (b, 0, 0)),
            wspec, wspec, wspec, wspec,
        ],
        out_specs=pl.BlockSpec((Bt, seq_pad, D), lambda b: (b, 0, 0)),
        compiler_params=pltpu.CompilerParams(
            dimension_semantics=("parallel",),
            vmem_limit_bytes=vmem_limit_bytes),
    )(patches2, prompt0, params["patch_w"], params["patch_b"],
      params["cls"], params["pos_emb"])


# ----------------------------------------------------------------------------
# One full ViT encoder layer (pre-LN attention + MLP, residuals) per pallas_call.
# x arrives batch-flattened and sequence-padded: (B*S_pad, D).
# ----------------------------------------------------------------------------
def _vit_layer_kernel(num_heads, batch_block, seq, seq_valid,
                      x_ref,
                      ln1w_ref, ln1b_ref,
                      wq_ref, bq_ref, wk_ref, bk_ref, wv_ref, bv_ref,
                      wo_ref, bo_ref,
                      ln2w_ref, ln2b_ref,
                      wi_ref, bi_ref, wf_ref, bf_ref,
                      out_ref):
    Bt, S, H = batch_block, seq, num_heads
    D = x_ref.shape[-1]
    dh = D // H
    scale = 1.0 / math.sqrt(dh)

    x = x_ref[...]                                            # (Bt*S, D) fp32

    # ---- attention block (pre-LN) ----
    h = _layernorm(x, ln1w_ref[...], ln1b_ref[...])
    hb = h.astype(jnp.bfloat16)
    # big-M projections: M = Bt*S, bf16 operands, fp32 accumulation.
    # Fold the 1/sqrt(dh) softmax scale into q (one (M,D) scale instead of
    # scaling each per-head (S,S) score matrix).
    q = ((jnp.dot(hb, wq_ref[...], preferred_element_type=jnp.float32)
          + bq_ref[...]) * scale).astype(jnp.bfloat16)
    k = (jnp.dot(hb, wk_ref[...], preferred_element_type=jnp.float32)
         + bk_ref[...]).astype(jnp.bfloat16)
    v = (jnp.dot(hb, wv_ref[...], preferred_element_type=jnp.float32)
         + bv_ref[...]).astype(jnp.bfloat16)

    if seq_valid < S:                     # additive key-padding mask (static)
        kmask = jnp.where(
            jax.lax.broadcasted_iota(jnp.int32, (1, S), 1) < seq_valid,
            0.0, NEG_INF).astype(jnp.float32)
    else:
        kmask = None

    attn_rows = []
    for b in range(Bt):                                       # static unroll
        r0 = b * S
        qb = q[r0:r0 + S, :]
        kb = k[r0:r0 + S, :]
        vb = v[r0:r0 + S, :]
        acc = jnp.zeros((S, D), jnp.float32)
        for hd in range(H):                                   # static unroll
            c0 = hd * dh
            # scores = (q*scale)_h @ k_h^T  (NT dot, fp32 accumulate)
            s = jax.lax.dot_general(
                qb[:, c0:c0 + dh], kb[:, c0:c0 + dh],
                (((1,), (1,)), ((), ())),
                preferred_element_type=jnp.float32)           # (S, S)
            if kmask is not None:
                s = s + kmask
            s = s - jnp.max(s, axis=-1, keepdims=True)
            e = jnp.exp(s)                                    # fp32
            l = jnp.sum(e, axis=-1, keepdims=True)            # (S, 1)
            ctx = jnp.dot(e.astype(jnp.bfloat16), vb[:, c0:c0 + dh],
                          preferred_element_type=jnp.float32) # (S, dh)
            # normalize AFTER the PV matmul: one (S,1) EUP reciprocal instead of
            # dividing the (S,S) matrix.
            ctx = ctx * pl.reciprocal(l, approx=True)
            # fold this head straight into the output projection (no lane concat)
            acc = acc + jnp.dot(ctx.astype(jnp.bfloat16),
                                wo_ref[c0:c0 + dh, :],
                                preferred_element_type=jnp.float32)
        attn_rows.append(acc)
    attn = jnp.concatenate(attn_rows, axis=0) if Bt > 1 else attn_rows[0]
    x1 = attn + bo_ref[...] + x                               # residual 1

    # ---- MLP block (pre-LN) ----
    h2 = _layernorm(x1, ln2w_ref[...], ln2b_ref[...]).astype(jnp.bfloat16)
    inter = (jnp.dot(h2, wi_ref[...], preferred_element_type=jnp.float32)
             + bi_ref[...])
    inter = jax.nn.gelu(inter, approximate=False).astype(jnp.bfloat16)
    out = (jnp.dot(inter, wf_ref[...], preferred_element_type=jnp.float32)
           + bf_ref[...] + x1)
    out_ref[...] = out


def vit_layer(x2, p, num_heads, *, batch_block, seq_pad, seq_valid,
              vmem_limit_bytes=VMEM_LIMIT_BYTES):
    BS, D = x2.shape
    assert BS % seq_pad == 0
    B = BS // seq_pad
    Bt = batch_block
    assert B % Bt == 0
    rows = Bt * seq_pad
    kern = functools.partial(_vit_layer_kernel, num_heads, Bt, seq_pad, seq_valid)
    # weights / biases: whole-array VMEM residents (no per-step double-buffering)
    wspec = pl.BlockSpec(memory_space=pltpu.MemorySpace.VMEM)
    return pl.pallas_call(
        kern,
        out_shape=jax.ShapeDtypeStruct((BS, D), jnp.float32),
        grid=(B // Bt,),
        in_specs=[pl.BlockSpec((rows, D), lambda i: (i, 0))] + [wspec] * 16,
        out_specs=pl.BlockSpec((rows, D), lambda i: (i, 0)),
        compiler_params=pltpu.CompilerParams(
            dimension_semantics=("parallel",),
            vmem_limit_bytes=vmem_limit_bytes),
    )(x2, p["ln1_w"], p["ln1_b"],
      p["wq"], p["bq"], p["wk"], p["bk"], p["wv"], p["bv"],
      p["wo"], p["bo"], p["ln2_w"], p["ln2_b"],
      p["wi"], p["bi"], p["wf"], p["bf"])


# ----------------------------------------------------------------------------
# Full forward (glue in plain JAX: patch extraction, padding, prompt re-inject)
# ----------------------------------------------------------------------------
def vit_prompt_tuning_forward(image, prompt, params, *, patch, num_heads,
                              deep=1, deep_replace_method="replace",
                              batch_block=None):
    B, C, H, W = image.shape
    D = params["patch_w"].shape[1]
    nph, npw = H // patch, W // patch
    P = nph * npw

    # patch extraction: same ordering as Conv2d(k=stride=patch) + flatten(2).T,
    # batch-flattened to (B*P, K) so the embed kernel sees one big-M matmul.
    patches2 = (image.reshape(B, C, nph, patch, npw, patch)
                     .transpose(0, 2, 4, 1, 3, 5)
                     .reshape(B * P, C * patch * patch))

    g = prompt[:, 0]                                  # (B, L, D)
    L = g.shape[1]
    S_valid = L + 1 + P
    S_pad = _round_up(S_valid, 8)
    Bt = _pick_batch_block(B, batch_block)

    x3 = embed_and_prepend(patches2, g, params, n_patches=P,
                           seq_pad=S_pad, batch_block=Bt)
    x2 = x3.reshape(B * S_pad, D)                     # batch-flattened, padded

    for i, lp in enumerate(params["layers"]):
        if 0 < i < deep:                              # never taken for deep=1
            xv = x2.reshape(B, S_pad, D)[:, :S_valid]
            if deep_replace_method == "replace":
                g = prompt[:, i]
            elif deep_replace_method == "accumulate":
                g = jnp.concatenate([xv[:, -L:, :], prompt[:, i]], axis=1)
            xv = jnp.concatenate([g, xv[:, L:, :]], axis=1)
            L = g.shape[1]
            S_valid = xv.shape[1]
            S_pad = _round_up(S_valid, 8)
            x2 = jnp.pad(xv, ((0, 0), (0, S_pad - S_valid), (0, 0)))
            x2 = x2.reshape(B * S_pad, D)
        x2 = vit_layer(x2, lp, num_heads, batch_block=Bt,
                       seq_pad=S_pad, seq_valid=S_valid)

    # last_hidden_state analogue (no final LayerNorm, per the PyTorch forward)
    return x2.reshape(B, S_pad, D)[:, :S_valid]


# ----------------------------------------------------------------------------
# Pure-JAX reference (mirrors the PyTorch math; same bf16 quantization points)
# ----------------------------------------------------------------------------
def _ref_ln(x, w, b):
    mu = x.mean(-1, keepdims=True)
    var = ((x - mu) ** 2).mean(-1, keepdims=True)
    return (x - mu) / jnp.sqrt(var + LN_EPS) * w + b


def _ref_layer(x, p, num_heads):
    B, S, D = x.shape
    dh = D // num_heads
    h = _ref_ln(x, p["ln1_w"], p["ln1_b"])
    hb = h.astype(jnp.bfloat16)
    q = jnp.einsum("bsd,de->bse", hb, p["wq"],
                   preferred_element_type=jnp.float32) + p["bq"]
    k = jnp.einsum("bsd,de->bse", hb, p["wk"],
                   preferred_element_type=jnp.float32) + p["bk"]
    v = jnp.einsum("bsd,de->bse", hb, p["wv"],
                   preferred_element_type=jnp.float32) + p["bv"]
    split = lambda t: (t.reshape(B, S, num_heads, dh)
                        .transpose(0, 2, 1, 3).astype(jnp.bfloat16))
    qh, kh, vh = split(q), split(k), split(v)
    w = jnp.einsum("bhqe,bhke->bhqk", qh, kh,
                   preferred_element_type=jnp.float32) / math.sqrt(dh)
    pr = jax.nn.softmax(w, axis=-1)
    ctx = jnp.einsum("bhqk,bhke->bhqe", pr.astype(jnp.bfloat16), vh,
                     preferred_element_type=jnp.float32)
    ctx = ctx.transpose(0, 2, 1, 3).reshape(B, S, D)
    attn = jnp.einsum("bsd,de->bse", ctx.astype(jnp.bfloat16), p["wo"],
                      preferred_element_type=jnp.float32) + p["bo"]
    x1 = attn + x
    h2 = _ref_ln(x1, p["ln2_w"], p["ln2_b"]).astype(jnp.bfloat16)
    inter = jnp.einsum("bsd,df->bsf", h2, p["wi"],
                       preferred_element_type=jnp.float32) + p["bi"]
    inter = jax.nn.gelu(inter, approximate=False).astype(jnp.bfloat16)
    return (jnp.einsum("bsf,fd->bsd", inter, p["wf"],
                       preferred_element_type=jnp.float32) + p["bf"] + x1)


def reference_forward(image, prompt, params, *, patch, num_heads,
                      deep=1, deep_replace_method="replace"):
    B, C, H, W = image.shape
    D = params["patch_w"].shape[1]
    nph, npw = H // patch, W // patch
    P = nph * npw
    patches = (image.reshape(B, C, nph, patch, npw, patch)
                    .transpose(0, 2, 4, 1, 3, 5)
                    .reshape(B, P, C * patch * patch))
    patch_tok = jnp.einsum("bpk,kd->bpd", patches.astype(jnp.bfloat16),
                           params["patch_w"],
                           preferred_element_type=jnp.float32) + params["patch_b"]
    cls_tok = jnp.broadcast_to(params["cls"][None], (B, 1, D))
    x = jnp.concatenate([cls_tok, patch_tok], axis=1) + params["pos_emb"][None]
    g = prompt[:, 0]
    x = jnp.concatenate([g, x], axis=1)
    L = g.shape[1]
    for i, lp in enumerate(params["layers"]):
        if 0 < i < deep:
            if deep_replace_method == "replace":
                g = prompt[:, i]
            elif deep_replace_method == "accumulate":
                g = jnp.concatenate([x[:, -L:, :], prompt[:, i]], axis=1)
            x = jnp.concatenate([g, x[:, L:, :]], axis=1)
            L = g.shape[1]
        x = _ref_layer(x, lp, num_heads)
    return x


# ----------------------------------------------------------------------------
# Deterministic parameter construction (weights bf16, biases/LN/pos fp32)
# ----------------------------------------------------------------------------
def make_params(key, *, channels, patch, d_model, d_ff, n_layers, n_patches):
    K = channels * patch * patch
    ks = jax.random.split(key, 4 + n_layers)
    s = 0.02
    f32, bf16 = jnp.float32, jnp.bfloat16
    params = {
        "patch_w": (s * jax.random.normal(ks[0], (K, d_model), f32)).astype(bf16),
        "patch_b": s * jax.random.normal(ks[1], (1, d_model), f32),
        "cls": s * jax.random.normal(ks[2], (1, d_model), f32),
        "pos_emb": s * jax.random.normal(ks[3], (n_patches + 1, d_model), f32),
        "layers": [],
    }
    for li in range(n_layers):
        lk = jax.random.split(ks[4 + li], 16)
        params["layers"].append({
            "ln1_w": 1.0 + 0.05 * jax.random.normal(lk[12], (1, d_model), f32),
            "ln1_b": 0.05 * jax.random.normal(lk[13], (1, d_model), f32),
            "wq": (s * jax.random.normal(lk[0], (d_model, d_model), f32)).astype(bf16),
            "bq": s * jax.random.normal(lk[1], (1, d_model), f32),
            "wk": (s * jax.random.normal(lk[2], (d_model, d_model), f32)).astype(bf16),
            "bk": s * jax.random.normal(lk[3], (1, d_model), f32),
            "wv": (s * jax.random.normal(lk[4], (d_model, d_model), f32)).astype(bf16),
            "bv": s * jax.random.normal(lk[5], (1, d_model), f32),
            "wo": (s * jax.random.normal(lk[6], (d_model, d_model), f32)).astype(bf16),
            "bo": s * jax.random.normal(lk[7], (1, d_model), f32),
            "ln2_w": 1.0 + 0.05 * jax.random.normal(lk[14], (1, d_model), f32),
            "ln2_b": 0.05 * jax.random.normal(lk[15], (1, d_model), f32),
            "wi": (s * jax.random.normal(lk[8], (d_model, d_ff), f32)).astype(bf16),
            "bi": s * jax.random.normal(lk[9], (1, d_ff), f32),
            "wf": (s * jax.random.normal(lk[10], (d_ff, d_model), f32)).astype(bf16),
            "bf": s * jax.random.normal(lk[11], (1, d_model), f32),
        })
    return params


if __name__ == "__main__":
    # Small, ViT-consistent shapes: 3-channel 16x16 image, patch 8 -> 4 patches,
    # d_model=32, 4 heads, ff=128, 2 layers, 4 prompt tokens, deep=1.
    # B=4 with batch_block=2 -> grid of 2 parallel steps, 2*S_pad rows per matmul.
    B, C, H, W = 4, 3, 16, 16
    PATCH, D, HEADS, FF, LAYERS = 8, 32, 4, 128, 2
    N_PROMPTS, DEEP = 4, 1
    N_PATCHES = (H // PATCH) * (W // PATCH)

    root = jax.random.PRNGKey(0)
    k_img, k_prompt, k_par = jax.random.split(root, 3)
    image = jax.random.normal(k_img, (B, C, H, W), jnp.float32)          # NCHW
    prompt = jax.random.normal(k_prompt, (B, DEEP, N_PROMPTS, D), jnp.float32)
    params = make_params(k_par, channels=C, patch=PATCH, d_model=D,
                         d_ff=FF, n_layers=LAYERS, n_patches=N_PATCHES)

    out = vit_prompt_tuning_forward(image, prompt, params, patch=PATCH,
                                    num_heads=HEADS, deep=DEEP,
                                    deep_replace_method="replace")
    out = jax.block_until_ready(out)

    ref = reference_forward(image, prompt, params, patch=PATCH, num_heads=HEADS,
                            deep=DEEP, deep_replace_method="replace")
    ref = jax.block_until_ready(ref)

    assert out.shape == (B, N_PROMPTS + 1 + N_PATCHES, D), out.shape
    err = float(jnp.max(jnp.abs(out - ref)))
    assert err < 5e-3, err
    print("KERNEL_OK")
</pallas_src>

<mosaic_0001>
module attributes {stable_mosaic.version = 11 : i64} {
  func.func @_embed_kernel(%arg0: i32, %arg1: memref<8x192xf32, #tpu.memory_space<vmem>>, %arg2: memref<2x4x32xf32, #tpu.memory_space<vmem>>, %arg3: memref<192x32xbf16, #tpu.memory_space<vmem>>, %arg4: memref<1x32xf32, #tpu.memory_space<vmem>>, %arg5: memref<1x32xf32, #tpu.memory_space<vmem>>, %arg6: memref<5x32xf32, #tpu.memory_space<vmem>>, %arg7: memref<2x16x32xf32, #tpu.memory_space<vmem>>) attributes {dimension_semantics = [#tpu.dimension_semantics<parallel>], iteration_bounds = array<i64: 2>, scalar_prefetch = 0 : i64, scratch_operands = 0 : i64, tpu.core_type = #tpu.core_type<tc>, window_params = [{transform_indices = @transform_0, window_bounds = array<i64: 8, 192>}, {transform_indices = @transform_1, window_bounds = array<i64: 2, 4, 32>}, {pipeline_mode = #tpu.pipeline_mode<synchronous>, transform_indices = @transform_2, window_bounds = array<i64: 192, 32>}, {pipeline_mode = #tpu.pipeline_mode<synchronous>, transform_indices = @transform_3, window_bounds = array<i64: 1, 32>}, {pipeline_mode = #tpu.pipeline_mode<synchronous>, transform_indices = @transform_4, window_bounds = array<i64: 1, 32>}, {pipeline_mode = #tpu.pipeline_mode<synchronous>, transform_indices = @transform_5, window_bounds = array<i64: 5, 32>}, {transform_indices = @transform_6, window_bounds = array<i64: 2, 16, 32>}]} {
    %c0 = arith.constant 0 : index
    %c0_0 = arith.constant 0 : index
    %0 = vector.load %arg1[%c0, %c0_0] : memref<8x192xf32, #tpu.memory_space<vmem>>, vector<8x192xf32>
    %1 = arith.truncf %0 : vector<8x192xf32> to vector<8x192xbf16>
    %c0_1 = arith.constant 0 : index
    %c0_2 = arith.constant 0 : index
    %2 = vector.load %arg3[%c0_1, %c0_2] : memref<192x32xbf16, #tpu.memory_space<vmem>>, vector<192x32xbf16>
    %cst = arith.constant dense<0.000000e+00> : vector<8x32xf32>
    %3 = tpu.matmul %1, %2, %cst {dimension_numbers = #tpu.dot_dimension_numbers<[1], [0], [0], [1], [0, 0, 1, 1], [], []>} : vector<8x192xbf16>, vector<192x32xbf16>, vector<8x32xf32> -> vector<8x32xf32>
    %c0_3 = arith.constant 0 : index
    %c0_4 = arith.constant 0 : index
    %4 = vector.load %arg5[%c0_3, %c0_4] : memref<1x32xf32, #tpu.memory_space<vmem>>, vector<1x32xf32>
    %c0_5 = arith.constant 0 : index
    %c0_6 = arith.constant 0 : index
    %5 = vector.load %arg6[%c0_5, %c0_6] : memref<5x32xf32, #tpu.memory_space<vmem>>, vector<1x32xf32>
    %6 = arith.addf %4, %5 : vector<1x32xf32>
    %c1 = arith.constant 1 : index
    %c0_7 = arith.constant 0 : index
    %7 = vector.load %arg6[%c1, %c0_7] : memref<5x32xf32, #tpu.memory_space<vmem>>, vector<4x32xf32>
    %8 = vector.extract_strided_slice %3 {offsets = [0, 0], sizes = [4, 32], strides = [1, 1]} : vector<8x32xf32> to vector<4x32xf32>
    %c0_8 = arith.constant 0 : index
    %c0_9 = arith.constant 0 : index
    %9 = vector.load %arg4[%c0_8, %c0_9] : memref<1x32xf32, #tpu.memory_space<vmem>>, vector<1x32xf32>
    %10 = vector.broadcast %9 : vector<1x32xf32> to vector<4x32xf32>
    %11 = arith.addf %8, %10 : vector<4x32xf32>
    %12 = arith.addf %11, %7 : vector<4x32xf32>
    %c0_10 = arith.constant 0 : index
    %c0_11 = arith.constant 0 : index
    %c0_12 = arith.constant 0 : index
    %13 = vector.load %arg2[%c0_10, %c0_11, %c0_12] : memref<2x4x32xf32, #tpu.memory_space<vmem>>, vector<1x4x32xf32>
    %14 = vector.shape_cast %13 : vector<1x4x32xf32> to vector<4x32xf32>
    %cst_13 = arith.constant 0.000000e+00 : f32
    %15 = vector.broadcast %cst_13 : f32 to vector<7x32xf32>
    %16 = tpu.concatenate %14, %6, %12, %15 in 0 : vector<4x32xf32>, vector<1x32xf32>, vector<4x32xf32>, vector<7x32xf32> -> vector<16x32xf32>
    %c0_14 = arith.constant 0 : index
    %c0_15 = arith.constant 0 : index
    %c0_16 = arith.constant 0 : index
    %17 = vector.load %arg7[%c0_14, %c0_15, %c0_16] : memref<2x16x32xf32, #tpu.memory_space<vmem>>, vector<1x16x32xf32>
    %18 = vector.shape_cast %17 : vector<1x16x32xf32> to vector<16x32xf32>
    %19 = vector.shape_cast %16 : vector<16x32xf32> to vector<1x16x32xf32>
    tpu.vector_store %arg7[%c0_14, %c0_15, %c0_16], %19 {strides = array<i32>} : memref<2x16x32xf32, #tpu.memory_space<vmem>>, vector<1x16x32xf32>,
    %20 = vector.extract_strided_slice %3 {offsets = [4, 0], sizes = [4, 32], strides = [1, 1]} : vector<8x32xf32> to vector<4x32xf32>
    %c0_17 = arith.constant 0 : index
    %c0_18 = arith.constant 0 : index
    %21 = vector.load %arg4[%c0_17, %c0_18] : memref<1x32xf32, #tpu.memory_space<vmem>>, vector<1x32xf32>
    %22 = vector.broadcast %21 : vector<1x32xf32> to vector<4x32xf32>
    %23 = arith.addf %20, %22 : vector<4x32xf32>
    %24 = arith.addf %23, %7 : vector<4x32xf32>
    %c1_19 = arith.constant 1 : index
    %c0_20 = arith.constant 0 : index
    %c0_21 = arith.constant 0 : index
    %25 = vector.load %arg2[%c1_19, %c0_20, %c0_21] : memref<2x4x32xf32, #tpu.memory_space<vmem>>, vector<1x4x32xf32>
    %26 = vector.shape_cast %25 : vector<1x4x32xf32> to vector<4x32xf32>
    %cst_22 = arith.constant 0.000000e+00 : f32
    %27 = vector.broadcast %cst_22 : f32 to vector<7x32xf32>
    %28 = tpu.concatenate %26, %6, %24, %27 in 0 : vector<4x32xf32>, vector<1x32xf32>, vector<4x32xf32>, vector<7x32xf32> -> vector<16x32xf32>
    %c1_23 = arith.constant 1 : index
    %c0_24 = arith.constant 0 : index
    %c0_25 = arith.constant 0 : index
    %29 = vector.load %arg7[%c1_23, %c0_24, %c0_25] : memref<2x16x32xf32, #tpu.memory_space<vmem>>, vector<1x16x32xf32>
    %30 = vector.shape_cast %29 : vector<1x16x32xf32> to vector<16x32xf32>
    %31 = vector.shape_cast %28 : vector<16x32xf32> to vector<1x16x32xf32>
    tpu.vector_store %arg7[%c1_23, %c0_24, %c0_25], %31 {strides = array<i32>} : memref<2x16x32xf32, #tpu.memory_space<vmem>>, vector<1x16x32xf32>,
    return
  }
  func.func @transform_0(%arg0: i32) -> (i32, i32) {
    %c0_i32 = arith.constant 0 : i32
    %c0_i32_0 = arith.constant 0 : i32
    return %arg0, %c0_i32 : i32, i32
  }
  func.func @transform_1(%arg0: i32) -> (i32, i32, i32) {
    %c0_i32 = arith.constant 0 : i32
    %c0_i32_0 = arith.constant 0 : i32
    %c0_i32_1 = arith.constant 0 : i32
    return %arg0, %c0_i32, %c0_i32_0 : i32, i32, i32
  }
  func.func @transform_2(%arg0: i32) -> (i32, i32) {
    %c0_i32 = arith.constant 0 : i32
    %c0_i32_0 = arith.constant 0 : i32
    %c0_i32_1 = arith.constant 0 : i32
    return %c0_i32, %c0_i32_0 : i32, i32
  }
  func.func @transform_3(%arg0: i32) -> (i32, i32) {
    %c0_i32 = arith.constant 0 : i32
    %c0_i32_0 = arith.constant 0 : i32
    %c0_i32_1 = arith.constant 0 : i32
    return %c0_i32, %c0_i32_0 : i32, i32
  }
  func.func @transform_4(%arg0: i32) -> (i32, i32) {
    %c0_i32 = arith.constant 0 : i32
    %c0_i32_0 = arith.constant 0 : i32
    %c0_i32_1 = arith.constant 0 : i32
    return %c0_i32, %c0_i32_0 : i32, i32
  }
  func.func @transform_5(%arg0: i32) -> (i32, i32) {
    %c0_i32 = arith.constant 0 : i32
    %c0_i32_0 = arith.constant 0 : i32
    %c0_i32_1 = arith.constant 0 : i32
    return %c0_i32, %c0_i32_0 : i32, i32
  }
  func.func @transform_6(%arg0: i32) -> (i32, i32, i32) {
    %c0_i32 = arith.constant 0 : i32
    %c0_i32_0 = arith.constant 0 : i32
    %c0_i32_1 = arith.constant 0 : i32
    return %arg0, %c0_i32, %c0_i32_0 : i32, i32, i32
  }
}

</mosaic_0001>

<llo_original>
// kernel: tpu_custom_call.1
$region0: #{tpu_custom_call.1}
  #allocation0 [shape = 'u32[]', space=smem, size = 0x4, offset = 0x4, fixed_abs, tag = 'smem constant byte address 0x4 - core index']
  #allocation1 [shape = 'u32[144,128]{1,0:T(1,128)}', space=vmem, size = 0x12000, scoped, tag = 'internal scratch']
  %s0 = inlined_call_operand.hbm [shape: f32[16,192], index: 0, kind: input, shape index: {}]
  %s1 = inlined_call_operand.hbm [shape: f32[4,4,32], index: 1, kind: input, shape index: {}]
  %s2 = inlined_call_operand.hbm [shape: bf16[192,32], index: 2, kind: input, shape index: {}]
  %s3 = inlined_call_operand.hbm [shape: f32[1,32], index: 3, kind: input, shape index: {}]
  %s4 = inlined_call_operand.hbm [shape: f32[1,32], index: 4, kind: input, shape index: {}]
  %s5 = inlined_call_operand.hbm [shape: f32[5,32], index: 5, kind: input, shape index: {}]
  %s6 = inlined_call_operand.hbm [shape: f32[4,16,32], index: 6, kind: output, shape index: {}]
  %s7 = sld [smem:[#allocation0]]
  $region81: #{tpu_custom_call.1} parent=0
    _
  %s9 = ssub.s32 1, %s7
  %s10 = scalar_select 0, %s9, %s7
  $region1: #{tpu_custom_call.1} parent=0
    #allocation2 [shape = 'u8[16384]{0}', space=vmem, size = 0x4000, scoped, tag = 'input window, operand 0']
    #allocation3 [shape = 's32[2]{0}', space=sflag, size = 0x8, scoped, tag = 'scoped memory for tpu_custom_call.1']
    #allocation4 [shape = 's32[2]{0}', space=sflag, size = 0x8, scoped, tag = 'scoped memory for tpu_custom_call.1']
    #allocation5 [shape = 'u8[8192]{0}', space=vmem, size = 0x2000, scoped, tag = 'input window, operand 1']
    #allocation6 [shape = 's32[2]{0}', space=sflag, size = 0x8, scoped, tag = 'scoped memory for tpu_custom_call.1']
    #allocation7 [shape = 'u8[49152]{0}', space=vmem, size = 0xc000, scoped, tag = 'input window, operand 2, single buffered']
    #allocation8 [shape = 'u8[512]{0}', space=vmem, size = 0x400, scoped, tag = 'input window, operand 3, single buffered']
    #allocation9 [shape = 's32[1]{0}', space=sflag, size = 0x4, scoped, tag = 'scoped memory for tpu_custom_call.1']
    #allocation10 [shape = 'u8[512]{0}', space=vmem, size = 0x400, scoped, tag = 'input window, operand 4, single buffered']
    #allocation11 [shape = 'u8[4096]{0}', space=vmem, size = 0x1000, scoped, tag = 'input window, operand 5, single buffered']
    #allocation12 [shape = 's32[1]{0}', space=sflag, size = 0x4, scoped, tag = 'scoped memory for tpu_custom_call.1']
    #allocation13 [shape = 'u8[32768]{0}', space=vmem, size = 0x8000, scoped, tag = 'output window, operand 0']
    %11 = vsyncpa [#allocation3], 0
    %s12 = scalar_lea.sflag [#allocation3], 1
    %13 = vsyncpa %s12, 0
    %14 = vsyncpa [#allocation6], 0
    %s15 = scalar_lea.sflag [#allocation6], 1
    %16 = vsyncpa %s15, 0
    %17 = vsyncpa [#allocation9], 0
    %18 = vsyncpa [#allocation12], 0
    %19 = vsyncpa [#allocation4], 0
    %s20 = scalar_lea.sflag [#allocation4], 1
    %21 = vsyncpa %s20, 0
    loop: start=0, step=1, limit=4
    $region2: #{tpu_custom_call.1} parent=1 // loop_pre_header
      _
    $region3: #{tpu_custom_call.1} parent=1 // loop_header
      %s23 = sphi 0, %s27
      %p24 = scmp.ge.s32.totalorder %s23, 4
      %s33 = sphi 0, %s35
      %s36 = sphi 0, %s33
      %s37 = sphi 0, %s36
      %s53 = sphi 0, %s37
      %s59 = sphi 0, %s61
      %s62 = sphi 0, %s59
      %s63 = sphi 0, %s62
      %s79 = sphi 0, %s63
      %s83 = sphi 0, %s83
      %s85 = sphi 0, %s83
      %s86 = sphi 0, %s85
      %s100 = sphi 0, %s86
      %s104 = sphi 0, %s104
      %s106 = sphi 0, %s104
      %s107 = sphi 0, %s106
      %s121 = sphi 0, %s107
      %s125 = sphi 0, %s125
      %s127 = sphi 0, %s125
      %s128 = sphi 0, %s127
      %s142 = sphi 0, %s128
      %s146 = sphi 0, %s146
      %s148 = sphi 0, %s146
      %s149 = sphi 0, %s148
      %s163 = sphi 0, %s149
      %s169 = sphi 0, %s171
      %s172 = sphi 0, %s169
      %s173 = sphi 0, %s172
      %s189 = sphi 0, %s173
    $region4: #{tpu_custom_call.1} parent=1 // loop_header_branch
      %26 = sbr.rel (%p24) target = $region8
    $region5: #{tpu_custom_call.1} parent=1 // loop_body
      %s28 = ssub.s32 %s23, 1
      %s29 = ssub.s32 %s23, 2
      %s30 = sadd.s32 %s23, 1
      %s31 = ssub.s32 %s23, %s30
      %p32 = scmp.eq.s32.totalorder %s31, 0
      %s34 = sadd.s32 %s33, 1
      %s35 = scalar_select %p32, %s33, %s34
      %p38 = pneg %p32
      %p39 = scmp.eq.s32.totalorder %s23, 1
      %p40 = por %p38, %p39
      %p41 = scmp.ne.s32.totalorder %s33, %s36
      %p42 = scmp.eq.s32.totalorder %s23, 0
      %p43 = por %p41, %p42
      %p44 = scmp.ne.s32.totalorder %s33, %s36
      %p45 = scmp.eq.s32.totalorder %s28, 1
      %p46 = por %p44, %p45
      %p47 = scmp.ne.s32.totalorder %s36, %s37
      %p48 = scmp.eq.s32.totalorder %s28, 0
      %p49 = por %p47, %p48
      %p50 = scmp.ne.s32.totalorder %s36, %s37
      %p51 = scmp.eq.s32.totalorder %s29, 1
      %p52 = por %p50, %p51
      %p54 = scmp.ne.s32.totalorder %s37, %s53
      %p55 = scmp.eq.s32.totalorder %s29, 0
      %p56 = por %p54, %p55
      %s57 = ssub.s32 %s23, %s30
      %p58 = scmp.eq.s32.totalorder %s57, 0
      %s60 = sadd.s32 %s59, 1
      %s61 = scalar_select %p58, %s59, %s60
      %p64 = pneg %p58
      %p65 = scmp.eq.s32.totalorder %s23, 1
      %p66 = por %p64, %p65
      %p67 = scmp.ne.s32.totalorder %s59, %s62
      %p68 = scmp.eq.s32.totalorder %s23, 0
      %p69 = por %p67, %p68
      %p70 = scmp.ne.s32.totalorder %s59, %s62
      %p71 = scmp.eq.s32.totalorder %s28, 1
      %p72 = por %p70, %p71
      %p73 = scmp.ne.s32.totalorder %s62, %s63
      %p74 = scmp.eq.s32.totalorder %s28, 0
      %p75 = por %p73, %p74
      %p76 = scmp.ne.s32.totalorder %s62, %s63
      %p77 = scmp.eq.s32.totalorder %s29, 1
      %p78 = por %p76, %p77
      %p80 = scmp.ne.s32.totalorder %s63, %s79
      %p81 = scmp.eq.s32.totalorder %s29, 0
      %p82 = por %p80, %p81
      %s84 = sadd.s32 %s83, 1
      %p87 = scmp.eq.s32.totalorder %s23, 1
      %p88 = scmp.ne.s32.totalorder %s83, %s85
      %p89 = scmp.eq.s32.totalorder %s23, 0
      %p90 = por %p88, %p89
      %p91 = scmp.ne.s32.totalorder %s83, %s85
      %p92 = scmp.eq.s32.totalorder %s28, 1
      %p93 = por %p91, %p92
      %p94 = scmp.ne.s32.totalorder %s85, %s86
      %p95 = scmp.eq.s32.totalorder %s28, 0
      %p96 = por %p94, %p95
      %p97 = scmp.ne.s32.totalorder %s85, %s86
      %p98 = scmp.eq.s32.totalorder %s29, 1
      %p99 = por %p97, %p98
      %p101 = scmp.ne.s32.totalorder %s86, %s100
      %p102 = scmp.eq.s32.totalorder %s29, 0
      %p103 = por %p101, %p102
      %s105 = sadd.s32 %s104, 1
      %p108 = scmp.eq.s32.totalorder %s23, 1
      %p109 = scmp.ne.s32.totalorder %s104, %s106
      %p110 = scmp.eq.s32.totalorder %s23, 0
      %p111 = por %p109, %p110
      %p112 = scmp.ne.s32.totalorder %s104, %s106
      %p113 = scmp.eq.s32.totalorder %s28, 1
      %p114 = por %p112, %p113
      %p115 = scmp.ne.s32.totalorder %s106, %s107
      %p116 = scmp.eq.s32.totalorder %s28, 0
      %p117 = por %p115, %p116
      %p118 = scmp.ne.s32.totalorder %s106, %s107
      %p119 = scmp.eq.s32.totalorder %s29, 1
      %p120 = por %p118, %p119
      %p122 = scmp.ne.s32.totalorder %s107, %s121
      %p123 = scmp.eq.s32.totalorder %s29, 0
      %p124 = por %p122, %p123
      %s126 = sadd.s32 %s125, 1
      %p129 = scmp.eq.s32.totalorder %s23, 1
      %p130 = scmp.ne.s32.totalorder %s125, %s127
      %p131 = scmp.eq.s32.totalorder %s23, 0
      %p132 = por %p130, %p131
      %p133 = scmp.ne.s32.totalorder %s125, %s127
      %p134 = scmp.eq.s32.totalorder %s28, 1
      %p135 = por %p133, %p134
      %p136 = scmp.ne.s32.totalorder %s127, %s128
      %p137 = scmp.eq.s32.totalorder %s28, 0
      %p138 = por %p136, %p137
      %p139 = scmp.ne.s32.totalorder %s127, %s128
      %p140 = scmp.eq.s32.totalorder %s29, 1
      %p141 = por %p139, %p140
      %p143 = scmp.ne.s32.totalorder %s128, %s142
      %p144 = scmp.eq.s32.totalorder %s29, 0
      %p145 = por %p143, %p144
      %s147 = sadd.s32 %s146, 1
      %p150 = scmp.eq.s32.totalorder %s23, 1
      %p151 = scmp.ne.s32.totalorder %s146, %s148
      %p152 = scmp.eq.s32.totalorder %s23, 0
      %p153 = por %p151, %p152
      %p154 = scmp.ne.s32.totalorder %s146, %s148
      %p155 = scmp.eq.s32.totalorder %s28, 1
      %p156 = por %p154, %p155
      %p157 = scmp.ne.s32.totalorder %s148, %s149
      %p158 = scmp.eq.s32.totalorder %s28, 0
      %p159 = por %p157, %p158
      %p160 = scmp.ne.s32.totalorder %s148, %s149
      %p161 = scmp.eq.s32.totalorder %s29, 1
      %p162 = por %p160, %p161
      %p164 = scmp.ne.s32.totalorder %s149, %s163
      %p165 = scmp.eq.s32.totalorder %s29, 0
      %p166 = por %p164, %p165
      %s167 = ssub.s32 %s23, %s30
      %p168 = scmp.eq.s32.totalorder %s167, 0
      %s170 = sadd.s32 %s169, 1
      %s171 = scalar_select %p168, %s169, %s170
      %p174 = pneg %p168
      %p175 = scmp.eq.s32.totalorder %s23, 1
      %p176 = por %p174, %p175
      %p177 = scmp.ne.s32.totalorder %s169, %s172
      %p178 = scmp.eq.s32.totalorder %s23, 0
      %p179 = por %p177, %p178
      %p180 = scmp.ne.s32.totalorder %s169, %s172
      %p181 = scmp.eq.s32.totalorder %s28, 1
      %p182 = por %p180, %p181
      %p183 = scmp.ne.s32.totalorder %s172, %s173
      %p184 = scmp.eq.s32.totalorder %s28, 0
      %p185 = por %p183, %p184
      %p186 = scmp.ne.s32.totalorder %s172, %s173
      %p187 = scmp.eq.s32.totalorder %s29, 1
      %p188 = por %p186, %p187
      %p190 = scmp.ne.s32.totalorder %s173, %s189
      %p191 = scmp.eq.s32.totalorder %s29, 0
      %p192 = por %p190, %p191
      %p193 = scmp.le.s32.totalorder 1, %s23
      %p194 = scmp.lt.s32.totalorder %s23, 3
      %p195 = pnand %p193, %p194
      %p196 = pneg %p195
      // Predicated region
      $region9: #{tpu_custom_call.1} parent=5 // pred_check
        _
      $region10: #{tpu_custom_call.1} parent=5 // pred_check_branch
        %198 = sbr.rel (%p195) target = $region12
      $region11: #{tpu_custom_call.1} parent=5 // pred_region
        %s199 = ssub.s32 %s23, 1
        // Predicated region
        $region13: #{tpu_custom_call.1} parent=11 // pred_check
          %p200 = pneg %p96
        $region14: #{tpu_custom_call.1} parent=11 // pred_check_branch
          %202 = sbr.rel (%p200) target = $region16
        $region15: #{tpu_custom_call.1} parent=11 // pred_region
          %s204 = ssub.s32 1536, 1536
          %205 = vsyncadd [#allocation6], %s204
          %s206 = sshll.u32 [#allocation7], 4
          %s207 = int_to_ptr.vmem [resolvable:$true] %s206
          %212 = dma.hbm_to_vmem [thread:$0]  %s2, 1536, %s207, [#allocation6], 64, 64, 4
        $region16: #{tpu_custom_call.1} parent=11 // pred_fallthru
          _
        // Predicated region
        $region17: #{tpu_custom_call.1} parent=11 // pred_check
          %p213 = pneg %p117
        $region18: #{tpu_custom_call.1} parent=11 // pred_check_branch
          %215 = sbr.rel (%p213) target = $region20
        $region19: #{tpu_custom_call.1} parent=11 // pred_region
          %s217 = ssub.s32 16, 16
          %218 = vsyncadd [#allocation9], %s217
          %s220 = sshll.u32 [#allocation8], 4
          %s221 = int_to_ptr.vmem [resolvable:$true] %s220
          %223 = dma.hbm_to_vmem [thread:$0]  %s3, 16, %s221, [#allocation9]
        $region20: #{tpu_custom_call.1} parent=11 // pred_fallthru
          _
        // Predicated region
        $region21: #{tpu_custom_call.1} parent=11 // pred_check
          %p224 = pneg %p138
        $region22: #{tpu_custom_call.1} parent=11 // pred_check_branch
          %226 = sbr.rel (%p224) target = $region24
        $region23: #{tpu_custom_call.1} parent=11 // pred_region
          %s228 = ssub.s32 16, 16
          %229 = vsyncadd [#allocation9], %s228
          %s231 = sshll.u32 [#allocation10], 4
          %s232 = int_to_ptr.vmem [resolvable:$true] %s231
          %234 = dma.hbm_to_vmem [thread:$0]  %s4, 16, %s232, [#allocation9]
        $region24: #{tpu_custom_call.1} parent=11 // pred_fallthru
          _
        // Predicated region
        $region25: #{tpu_custom_call.1} parent=11 // pred_check
          %p235 = pneg %p159
        $region26: #{tpu_custom_call.1} parent=11 // pred_check_branch
          %237 = sbr.rel (%p235) target = $region28
        $region27: #{tpu_custom_call.1} parent=11 // pred_region
          %s239 = ssub.s32 128, 128
          %240 = vsyncadd [#allocation12], %s239
          %s242 = sshll.u32 [#allocation11], 4
          %s243 = int_to_ptr.vmem [resolvable:$true] %s242
          %245 = dma.hbm_to_vmem [thread:$0]  %s5, 128, %s243, [#allocation12]
        $region28: #{tpu_custom_call.1} parent=11 // pred_fallthru
          _
      $region12: #{tpu_custom_call.1} parent=5 // pred_fallthru
        _
      %p246 = scmp.lt.s32.totalorder %s23, 2
      // Predicated region
      $region29: #{tpu_custom_call.1} parent=5 // pred_check
        %p247 = pneg %p246
      $region30: #{tpu_custom_call.1} parent=5 // pred_check_branch
        %249 = sbr.rel (%p247) target = $region32
      $region31: #{tpu_custom_call.1} parent=5 // pred_region
        // Predicated region
        $region33: #{tpu_custom_call.1} parent=31 // pred_check
          %p250 = pneg %p43
        $region34: #{tpu_custom_call.1} parent=31 // pred_check_branch
          %252 = sbr.rel (%p250) target = $region36
        $region35: #{tpu_custom_call.1} parent=31 // pred_region
          %s253 = sand.u32 %s33, 1
          %s254 = scalar_lea.sflag [#allocation3], %s253
          %s255 = sand.u32 %s33, 1
          %s256 = smul.addr %s255, 16
          %s257 = scalar_lea.vmem [#allocation2], %s256
          %s259 = ssub.s32 256, 256
          %260 = vsyncadd %s254, %s259
          %s261 = smul.addr %s23, 2
          %s262 = smul.addr %s261, 128
          %s263 = scalar_lea.hbm %s0, %s262
          %s265 = sshll.u32 %s257, 4
          %s266 = int_to_ptr.vmem [resolvable:$true] %s265
          %268 = dma.hbm_to_vmem [thread:$0]  %s263, 256, %s266, %s254
        $region36: #{tpu_custom_call.1} parent=31 // pred_fallthru
          _
        // Predicated region
        $region37: #{tpu_custom_call.1} parent=31 // pred_check
          %p269 = pneg %p69
        $region38: #{tpu_custom_call.1} parent=31 // pred_check_branch
          %271 = sbr.rel (%p269) target = $region40
        $region39: #{tpu_custom_call.1} parent=31 // pred_region
          %s272 = sand.u32 %s23, 1
          %s273 = scalar_lea.sflag [#allocation6], %s272
          %s274 = sand.u32 %s59, 1
          %s275 = smul.addr %s274, 8
          %s276 = scalar_lea.vmem [#allocation5], %s275
          %s277 = smul.u32 2, %s23
          %s279 = ssub.s32 128, 128
          %280 = vsyncadd %s273, %s279
          %s281 = smul.addr %s277, 64
          %s282 = scalar_lea.hbm %s1, %s281
          %s283 = sshll.u32 %s276, 4
          %s284 = int_to_ptr.vmem [resolvable:$true] %s283
          %289 = dma.hbm_to_vmem [thread:$0]  %s282, 128, %s284, %s273, 64, 64, 4
        $region40: #{tpu_custom_call.1} parent=31 // pred_fallthru
          _
      $region32: #{tpu_custom_call.1} parent=5 // pred_fallthru
        _
      %p290 = scmp.le.s32.totalorder 1, %s23
      %p291 = scmp.lt.s32.totalorder %s23, 3
      %p292 = pnand %p290, %p291
      %p293 = pneg %p292
      // Predicated region
      $region41: #{tpu_custom_call.1} parent=5 // pred_check
        _
      $region42: #{tpu_custom_call.1} parent=5 // pred_check_branch
        %295 = sbr.rel (%p292) target = $region44
      $region43: #{tpu_custom_call.1} parent=5 // pred_region
        %s296 = ssub.s32 %s23, 1
        %s297 = sand.u32 %s36, 1
        %s298 = scalar_lea.sflag [#allocation3], %s297
        %s299 = sand.u32 %s36, 1
        %s300 = smul.addr %s299, 16
        %s301 = scalar_lea.vmem [#allocation2], %s300
        // Predicated region
        $region45: #{tpu_custom_call.1} parent=43 // pred_check
          %p302 = pneg %p49
        $region46: #{tpu_custom_call.1} parent=43 // pred_check_branch
          %304 = sbr.rel (%p302) target = $region48
        $region47: #{tpu_custom_call.1} parent=43 // pred_region
          %305 = dma.done %s298, 256
        $region48: #{tpu_custom_call.1} parent=43 // pred_fallthru
          _
        %s306 = sand.u32 %s28, 1
        %s307 = scalar_lea.sflag [#allocation6], %s306
        %s308 = sand.u32 %s62, 1
        %s309 = smul.addr %s308, 8
        %s310 = scalar_lea.vmem [#allocation5], %s309
        // Predicated region
        $region49: #{tpu_custom_call.1} parent=43 // pred_check
          %p311 = pneg %p75
        $region50: #{tpu_custom_call.1} parent=43 // pred_check_branch
          %313 = sbr.rel (%p311) target = $region52
        $region51: #{tpu_custom_call.1} parent=43 // pred_region
          %314 = dma.done %s307, 128
        $region52: #{tpu_custom_call.1} parent=43 // pred_fallthru
          _
        // Predicated region
        $region53: #{tpu_custom_call.1} parent=43 // pred_check
          %p315 = pneg %p96
        $region54: #{tpu_custom_call.1} parent=43 // pred_check_branch
          %317 = sbr.rel (%p315) target = $region56
        $region55: #{tpu_custom_call.1} parent=43 // pred_region
          %318 = dma.done [#allocation6], 1536
        $region56: #{tpu_custom_call.1} parent=43 // pred_fallthru
          _
        // Predicated region
        $region57: #{tpu_custom_call.1} parent=43 // pred_check
          %p319 = pneg %p117
        $region58: #{tpu_custom_call.1} parent=43 // pred_check_branch
          %321 = sbr.rel (%p319) target = $region60
        $region59: #{tpu_custom_call.1} parent=43 // pred_region
          %322 = dma.done [#allocation9], 16
        $region60: #{tpu_custom_call.1} parent=43 // pred_fallthru
          _
        // Predicated region
        $region61: #{tpu_custom_call.1} parent=43 // pred_check
          %p323 = pneg %p138
        $region62: #{tpu_custom_call.1} parent=43 // pred_check_branch
          %325 = sbr.rel (%p323) target = $region64
        $region63: #{tpu_custom_call.1} parent=43 // pred_region
          %326 = dma.done [#allocation9], 16
        $region64: #{tpu_custom_call.1} parent=43 // pred_fallthru
          _
        // Predicated region
        $region65: #{tpu_custom_call.1} parent=43 // pred_check
          %p327 = pneg %p159
        $region66: #{tpu_custom_call.1} parent=43 // pred_check_branch
          %329 = sbr.rel (%p327) target = $region68
        $region67: #{tpu_custom_call.1} parent=43 // pred_region
          %330 = dma.done [#allocation12], 128
        $region68: #{tpu_custom_call.1} parent=43 // pred_fallthru
          _
        %s331 = sand.u32 %s36, 1
        %s332 = scalar_lea.sflag [#allocation3], %s331
        %s333 = sand.u32 %s36, 1
        %s334 = smul.addr %s333, 16
        %s335 = scalar_lea.vmem [#allocation2], %s334
        %p336 = pneg %p49
        %p337 = pneg %p46
        %s338 = sand.u32 %s28, 1
        %s339 = scalar_lea.sflag [#allocation6], %s338
        %s340 = sand.u32 %s62, 1
        %s341 = smul.addr %s340, 8
        %s342 = scalar_lea.vmem [#allocation5], %s341
        %p343 = pneg %p75
        %p344 = pneg %p72
        %p345 = pneg %p96
        %p346 = pneg %p93
        %p347 = pneg %p117
        %p348 = pneg %p114
        %p349 = pneg %p138
        %p350 = pneg %p135
        %p351 = pneg %p159
        %p352 = pneg %p156
        %p353 = pneg %p185
        %p354 = pneg %p182
        %s355 = sand.u32 %s172, 1
        %s356 = scalar_lea.sflag [#allocation4], %s355
        %s357 = sand.u32 %s172, 1
        %s358 = smul.addr %s357, 32
        %s359 = scalar_lea.vmem [#allocation13], %s358
        %s360 = smul.u32 2, %s28
        %s361 = smul.u32 2, %s28
        %v363 = vld [vmem:[%s301] sm:$0xff]
        %v364 = vld [vmem:[%s301 + $0x8] sm:$0xff]
        %v365 = vpack.c.bf16 %v363, %v363
        %v366 = vpack.c.bf16 %v364, %v364
        %v367 = vld [vmem:[#allocation7] sm:$0xf]
        %v368 = vld [vmem:[#allocation7 + $0x4] sm:$0xf]
        %v369 = vld [vmem:[#allocation7 + $0x8] sm:$0xf]
        %v370 = vld [vmem:[#allocation7 + $0xc] sm:$0xf]
        %v371 = vld [vmem:[#allocation7 + $0x10] sm:$0xf]
        %v372 = vld [vmem:[#allocation7 + $0x14] sm:$0xf]
        %v373 = vld [vmem:[#allocation7 + $0x18] sm:$0xf]
        %v374 = vld [vmem:[#allocation7 + $0x1c] sm:$0xf]
        %v375 = vld [vmem:[#allocation7 + $0x20] sm:$0xf]
        %v376 = vld [vmem:[#allocation7 + $0x24] sm:$0xf]
        %v377 = vld [vmem:[#allocation7 + $0x28] sm:$0xf]
        %v378 = vld [vmem:[#allocation7 + $0x2c] sm:$0xf]
        %v379 = vld [vmem:[#allocation7 + $0x30] sm:$0xf]
        %v380 = vld [vmem:[#allocation7 + $0x34] sm:$0xf]
        %v381 = vld [vmem:[#allocation7 + $0x38] sm:$0xf]
        %v382 = vld [vmem:[#allocation7 + $0x3c] sm:$0xf]
        %v383 = vld [vmem:[#allocation7 + $0x40] sm:$0xf]
        %v384 = vld [vmem:[#allocation7 + $0x44] sm:$0xf]
        %v385 = vld [vmem:[#allocation7 + $0x48] sm:$0xf]
        %v386 = vld [vmem:[#allocation7 + $0x4c] sm:$0xf]
        %v387 = vld [vmem:[#allocation7 + $0x50] sm:$0xf]
        %v388 = vld [vmem:[#allocation7 + $0x54] sm:$0xf]
        %v389 = vld [vmem:[#allocation7 + $0x58] sm:$0xf]
        %v390 = vld [vmem:[#allocation7 + $0x5c] sm:$0xf]
        %v415 = vunpack.c.l.b16 %v367
        %v416 = vunpack.c.l.b16 %v368
        %v417 = vunpack.c.l.b16 %v369
        %v418 = vunpack.c.l.b16 %v370
        %v419 = vunpack.c.l.b16 %v371
        %v420 = vunpack.c.l.b16 %v372
        %v421 = vunpack.c.l.b16 %v373
        %v422 = vunpack.c.l.b16 %v374
        %v423 = vunpack.c.l.b16 %v375
        %v424 = vunpack.c.l.b16 %v376
        %v425 = vunpack.c.l.b16 %v377
        %v426 = vunpack.c.l.b16 %v378
        %v427 = vunpack.c.l.b16 %v379
        %v428 = vunpack.c.l.b16 %v380
        %v429 = vunpack.c.l.b16 %v381
        %v430 = vunpack.c.l.b16 %v382
        %v431 = vunpack.c.l.b16 %v383
        %v432 = vunpack.c.l.b16 %v384
        %v433 = vunpack.c.l.b16 %v385
        %v434 = vunpack.c.l.b16 %v386
        %v435 = vunpack.c.l.b16 %v387
        %v436 = vunpack.c.l.b16 %v388
        %v437 = vunpack.c.l.b16 %v389
        %v438 = vunpack.c.l.b16 %v390
        %v439 = vpack.c.b16 %v416, %v415
        %v440 = vpack.c.b16 %v418, %v417
        %v441 = vpack.c.b16 %v420, %v419
        %v442 = vpack.c.b16 %v422, %v421
        %v443 = vpack.c.b16 %v424, %v423
        %v444 = vpack.c.b16 %v426, %v425
        %v445 = vpack.c.b16 %v428, %v427
        %v446 = vpack.c.b16 %v430, %v429
        %v447 = vpack.c.b16 %v432, %v431
        %v448 = vpack.c.b16 %v434, %v433
        %v449 = vpack.c.b16 %v436, %v435
        %v450 = vpack.c.b16 %v438, %v437
        %vm463 = vcmask 523264
        %v465 = vsel %vm463, %v366, 0
        %467 = vmatprep.subr.bf16.mxu0 0
        %468 = vmatpush1.bf16.msra.mxu0 %v439
        %469 = vmatprep.subr.bf16.mxu0 0
        %470 = vmatpush1.bf16.msra.mxu0 %v440
        %471 = vmatprep.subr.bf16.mxu0 0
        %472 = vmatpush1.bf16.msra.mxu0 %v441
        %473 = vmatprep.subr.bf16.mxu0 0
        %474 = vmatpush1.bf16.msra.mxu0 %v442
        %475 = vmatprep.subr.bf16.mxu0 0
        %476 = vmatpush1.bf16.msra.mxu0 %v443
        %477 = vmatprep.subr.bf16.mxu0 0
        %478 = vmatpush1.bf16.msra.mxu0 %v444
        %479 = vmatprep.subr.bf16.mxu0 0
        %480 = vmatpush1.bf16.msra.mxu0 %v445
        %481 = vmatprep.subr.bf16.mxu0 0
        %482 = vmatpush1.bf16.msra.mxu0 %v446
        %483 = vmatprep.subr.bf16.mxu0 0
        %484 = vmatpush1.bf16.msra.mxu0 %v447
        %485 = vmatprep.subr.bf16.mxu0 0
        %486 = vmatpush1.bf16.msra.mxu0 %v448
        %487 = vmatprep.subr.bf16.mxu0 0
        %488 = vmatpush1.bf16.msra.mxu0 %v449
        %489 = vmatprep.subr.bf16.mxu0 0
        %490 = vmatpush1.bf16.msra.mxu0 %v450
        %491 = vmatprep.subr.bf16.mxu0 0
        %492 = vmatpush1.bf16.msra.mxu0 0
        %493 = vmatprep.subr.bf16.mxu0 0
        %494 = vmatpush1.bf16.msra.mxu0 0
        %495 = vmatprep.subr.bf16.mxu0 0
        %496 = vmatpush1.bf16.msra.mxu0 0
        %497 = vmatprep.subr.bf16.mxu0 0
        %498 = vmatpush1.bf16.msra.mxu0 0
        %499 = vmatprep.mubr.bf16.mxu0 %v465
        %500 = vmatmul.mubr.bf16.gmra.mrb[0].mxu0 %v365
        %v501 = vpop.f32.mrb[0].mxu0
        %v502 = vadd.f32 0.0, %v501
        %v503 = vpop.f32.mrb[0].mxu0
        %v504 = vpop.f32.mrb[0].mxu0
        %v505 = vpop.f32.mrb[0].mxu0
        %506 = vdwg.mxu0
        %v507 = vld [vmem:[#allocation10] sm:$0x1]
        %v508 = vld [vmem:[#allocation11] sm:$0x1]
        %v509 = vadd.f32 %v507, %v508
        %v510 = vld [vmem:[#allocation11 + $0x1] sm:$0xf]
        %v511 = vld [vmem:[#allocation8] sm:$0x1]
        %v513 = vlaneseq
        %v514 = vshrl.u32 %v513, 7
        %v515 = vsub.s32 0, %v514
        %v516 = vrot.slane %v511, %v515
        %v518 = vadd.f32 %v502, %v516
        %v519 = vadd.f32 %v518, %v510
        %v520 = vld [vmem:[%s310] sm:$0xf]
        %v522 = vlaneseq
        %v523 = vshrl.u32 %v522, 7
        %v524 = vsub.s32 0, %v523
        %v525 = vrot.slane %v509, %v524
        %v528 = vrot.slane %v519, 3
        %vm530 = vcmask 1043456
        %v531 = vsel %vm530, %v520, %v525
        %vm532 = vcmask 1044480
        %v533 = vsel %vm532, %v531, %v528
        %vm534 = vcmask 1040384
        %v535 = vsel %vm534, %v528, 0.0
        %vm536 = vcmask 261120
        %537 = vst.msk [vmem:[%s359] sm:$0xff] %vm536, %v533
        %538 = vst.msk [vmem:[%s359 + $0x8] sm:$0xff] %vm536, %v535
        %v539 = vld [vmem:[#allocation8] sm:$0x1]
        %v541 = vlaneseq
        %v542 = vshrl.u32 %v541, 7
        %v543 = vsub.s32 0, %v542
        %v544 = vrot.slane %v539, %v543
        %v546 = vadd.f32 %v502, %v544
        %v548 = vrot.slane %v510, 4
        %v550 = vadd.f32 %v546, %v548
        %s551 = scalar_lea.vmem %s310, 4 [#allocation5]
        %v552 = vld [vmem:[%s551] sm:$0xf]
        %v554 = vrot.slane %v550, 7
        %v556 = vsel %vm530, %v552, %v525
        %v557 = vsel %vm532, %v556, %v554
        %v558 = vsel %vm534, %v554, 0.0
        %s559 = scalar_lea.vmem %s359, 16 [#allocation13]
        %560 = vst.msk [vmem:[%s559] sm:$0xff] %vm536, %v557
        %561 = vst.msk [vmem:[%s559 + $0x8] sm:$0xff] %vm536, %v558
        %s562 = sand.u32 %s172, 1
        %s563 = scalar_lea.sflag [#allocation4], %s562
        %s564 = sand.u32 %s172, 1
        %s565 = smul.addr %s564, 32
        %s566 = scalar_lea.vmem [#allocation13], %s565
        // Predicated region
        $region69: #{tpu_custom_call.1} parent=43 // pred_check
          %p567 = pneg %p182
        $region70: #{tpu_custom_call.1} parent=43 // pred_check_branch
          %569 = sbr.rel (%p567) target = $region72
        $region71: #{tpu_custom_call.1} parent=43 // pred_region
          %s570 = smul.u32 2, %s28
          %s572 = ssub.s32 512, 512
          %573 = vsyncadd %s563, %s572
          %s574 = smul.addr %s570, 2
          %s575 = smul.addr %s574, 128
          %s576 = scalar_lea.hbm %s6, %s575
          %s577 = sshll.u32 %s566, 4
          %s578 = int_to_ptr.vmem [resolvable:$true] %s577
          %583 = dma.vmem_to_hbm [thread:$0]  %s578, 512, %s576, %s563, 128, 128, 8
        $region72: #{tpu_custom_call.1} parent=43 // pred_fallthru
          _
      $region44: #{tpu_custom_call.1} parent=5 // pred_fallthru
        _
      %p584 = scmp.le.s32.totalorder 2, %s23
      // Predicated region
      $region73: #{tpu_custom_call.1} parent=5 // pred_check
        %p585 = pneg %p584
      $region74: #{tpu_custom_call.1} parent=5 // pred_check_branch
        %587 = sbr.rel (%p585) target = $region76
      $region75: #{tpu_custom_call.1} parent=5 // pred_region
        %s588 = ssub.s32 %s23, 2
        // Predicated region
        $region77: #{tpu_custom_call.1} parent=75 // pred_check
          %p589 = pneg %p188
        $region78: #{tpu_custom_call.1} parent=75 // pred_check_branch
          %591 = sbr.rel (%p589) target = $region80
        $region79: #{tpu_custom_call.1} parent=75 // pred_region
          %s592 = sand.u32 %s173, 1
          %s593 = scalar_lea.sflag [#allocation4], %s592
          %s594 = sand.u32 %s173, 1
          %s595 = smul.addr %s594, 32
          %s596 = scalar_lea.vmem [#allocation13], %s595
          %597 = dma.done %s593, 512
        $region80: #{tpu_custom_call.1} parent=75 // pred_fallthru
          _
      $region76: #{tpu_custom_call.1} parent=5 // pred_fallthru
        _
    $region6: #{tpu_custom_call.1} parent=1 // loop_footer
      %s27 = sadd.s32 1, %s23
    $region7: #{tpu_custom_call.1} parent=1 // loop_footer_branch
      %22 = sbr.rel target = $region3
    $region8: #{tpu_custom_call.1} parent=1 // loop_exit
      _
    %598 = vsyncpa [#allocation3], 1
    %s599 = scalar_lea.sflag [#allocation3], 1
    %600 = vsyncpa %s599, 1
    %601 = vsyncpa [#allocation6], 1
    %s602 = scalar_lea.sflag [#allocation6], 1
    %603 = vsyncpa %s602, 1
    %604 = vsyncpa [#allocation9], 1
    %605 = vsyncpa [#allocation12], 1
    %606 = vsyncpa [#allocation4], 1
    %s607 = scalar_lea.sflag [#allocation4], 1
    %608 = vsyncpa %s607, 1

</llo_original>
